<compile_context>
chip_gen: v5e
topology: v5e:2x2
jax: 0.10.0
libtpu: 0.0.40
codegen_flags: <defaults>
</compile_context>

<pallas_src>
import functools

import jax
import jax.numpy as jnp
from jax.experimental import pallas as pl
from jax.experimental.pallas import tpu as pltpu

_LANES = 128


def _soft_relu_kernel(x_ref, o_ref, *, offset):
    # f32 compute regardless of storage dtype: uniform numerics across chip
    # generations (v5e has no bf16 VALU anyway); free since we are memory-bound.
    x = x_ref[...].astype(jnp.float32)
    relu6 = jnp.clip(x - offset, 0.0, 6.0)
    o_ref[...] = (x * relu6 / 6.0).astype(o_ref.dtype)


def _soft_relu_xla(x, offset):
    """Tiny XLA fallback for the <128-element unaligned tail."""
    xf = x.astype(jnp.float32)
    relu6 = jnp.clip(xf - offset, 0.0, 6.0)
    return (xf * relu6 / 6.0).astype(x.dtype)


def _block_byte_budget() -> int:
    """Per-array block byte budget (generation-aware).

    Double-buffered in+out uses 4x this figure; keep that under each
    generation's scoped-VMEM default so no vmem_limit_bytes override is needed.
    """
    try:
        kind = jax.devices()[0].device_kind.lower()
    except Exception:  # pragma: no cover - defensive; fall back to safe default
        kind = ""
    if " v2" in kind or " v3" in kind:
        return 1 << 20  # very small scoped VMEM on old chips
    if "v5e" in kind or "v5 lite" in kind or "v5litepod" in kind:
        return 2 << 20  # 8 MiB total double-buffered < 16 MiB scoped default
    return 4 << 20      # v6e / v7x / v5p: 16 MiB total < 32 MiB scoped default


def _soft_relu_2d(x2d, offset, *, block_bytes, donate):
    rows, lanes = x2d.shape
    dtype = x2d.dtype
    itemsize = jnp.dtype(dtype).itemsize

    # Minimum sublane tile: 8 rows x 32-bit packing (16 for bf16, 32 for int8/fp8).
    packing = max(1, 4 // itemsize)
    min_rows = 8 * packing

    budget = _block_byte_budget() if block_bytes is None else int(block_bytes)
    # Constant-byte blocks across dtypes; always a multiple of min_rows.
    block_rows = (budget // (lanes * itemsize)) // min_rows * min_rows
    block_rows = max(block_rows, min_rows)
    # Never bigger than the (min_rows-rounded) array: single-block case.
    block_rows = min(block_rows, pl.cdiv(rows, min_rows) * min_rows)
    grid = (pl.cdiv(rows, block_rows),)

    n = rows * lanes
    cost = pl.CostEstimate(
        flops=5 * n,                      # sub, max, min, mul, div per element
        transcendentals=0,
        bytes_accessed=2 * n * itemsize,  # one read + one write of the tensor
    )

    return pl.pallas_call(
        functools.partial(_soft_relu_kernel, offset=float(offset)),
        out_shape=jax.ShapeDtypeStruct((rows, lanes), dtype),
        grid=grid,
        in_specs=[pl.BlockSpec((block_rows, lanes), lambda i: (i, 0))],
        out_specs=pl.BlockSpec((block_rows, lanes), lambda i: (i, 0)),
        compiler_params=pltpu.CompilerParams(
            dimension_semantics=("parallel",),
        ),
        cost_estimate=cost,
        input_output_aliases=({0: 0} if donate else {}),
    )(x2d)


def soft_relu(x: jax.Array, offset: float = -2.0, *,
              block_bytes: int | None = None, donate: bool = False) -> jax.Array:
    """SoftReLU forward: x * relu6(x - offset) / 6, elementwise.

    block_bytes: per-array VMEM block budget override (default: generation-aware).
    donate:      alias the output onto the input buffer (caller must not reuse x).
    """
    orig_shape = x.shape
    n = x.size
    if n == 0:
        return x

    flat = x.reshape(-1)
    n_main = (n // _LANES) * _LANES

    tail = None
    if n_main != n:
        # <128-element unaligned tail: tiny XLA op instead of a full-tensor
        # pad + slice round trip (which would triple HBM traffic).
        tail = _soft_relu_xla(flat[n_main:], offset)
    if n_main == 0:
        return tail.reshape(orig_shape)

    x2d = flat[:n_main].reshape(n_main // _LANES, _LANES)
    out2d = _soft_relu_2d(x2d, offset, block_bytes=block_bytes, donate=donate)

    if tail is None:
        return out2d.reshape(orig_shape)
    return jnp.concatenate([out2d.reshape(-1), tail]).reshape(orig_shape)


# TODO(synk): offset_to_parameter=True (learnable nn.Parameter offset) would pass the
# scalar through a (1, 1) SMEM operand instead of the static closure constant used here.
# The `inplace` flag has no meaning under JAX's functional semantics (use donate=True).


def soft_relu_ref(x, offset=-2.0):
    xf = x.astype(jnp.float32)
    relu6 = jnp.clip(xf - offset, 0.0, 6.0)
    return xf * relu6 / 6.0


if __name__ == "__main__":
    key = jax.random.PRNGKey(0)
    offset = -2.0  # module default; offset_to_parameter=False -> plain constant

    # NCHW conv-activation shaped input (batch=2, channels=4, 16x16 spatial).
    x = jax.random.normal(key, (2, 4, 16, 16), dtype=jnp.float32) * 3.0
    y = jax.block_until_ready(soft_relu(x, offset=offset))
    assert y.shape == x.shape and y.dtype == x.dtype
    assert jnp.allclose(y, soft_relu_ref(x, offset=offset), atol=1e-6, rtol=1e-6)

    k1, k2, k3 = jax.random.split(key, 3)

    # Multi-block grid path: small tensor, artificially small block budget.
    x_mb = jax.random.normal(k1, (2, 8, 32, 32), dtype=jnp.float32)
    y_mb = jax.block_until_ready(soft_relu(x_mb, offset=offset, block_bytes=8 * 1024))
    assert jnp.allclose(y_mb, soft_relu_ref(x_mb, offset=offset), atol=1e-6, rtol=1e-6)

    # bf16 path (constant-byte blocks; f32 compute inside the kernel).
    x_bf = (jax.random.normal(k2, (2, 4, 16, 16), dtype=jnp.float32) * 3.0).astype(jnp.bfloat16)
    y_bf = jax.block_until_ready(soft_relu(x_bf, offset=offset))
    assert y_bf.dtype == jnp.bfloat16
    assert jnp.allclose(y_bf.astype(jnp.float32),
                        soft_relu_ref(x_bf.astype(jnp.float32), offset=offset),
                        atol=2e-2, rtol=2e-2)

    # Ragged size: 128-aligned prefix via Pallas + <128-element XLA tail.
    x_rag = jax.random.normal(k3, (2, 3, 101), dtype=jnp.float32)
    y_rag = jax.block_until_ready(soft_relu(x_rag, offset=offset))
    assert jnp.allclose(y_rag, soft_relu_ref(x_rag, offset=offset), atol=1e-6, rtol=1e-6)

    # Tiny input (< 128 elements): handled entirely by the XLA tail path.
    x_tiny = jax.random.normal(key, (3, 5, 7), dtype=jnp.float32)
    y_tiny = jax.block_until_ready(soft_relu(x_tiny, offset=offset))
    assert jnp.allclose(y_tiny, soft_relu_ref(x_tiny, offset=offset), atol=1e-6, rtol=1e-6)

    print("KERNEL_OK")
</pallas_src>

<mosaic_0001>
module attributes {stable_mosaic.version = 11 : i64} {
  func.func @_soft_relu_kernel(%arg0: i32, %arg1: memref<16x128xf32, #tpu.memory_space<vmem>>, %arg2: memref<16x128xf32, #tpu.memory_space<vmem>>) attributes {dimension_semantics = [#tpu.dimension_semantics<parallel>], iteration_bounds = array<i64: 1>, scalar_prefetch = 0 : i64, scratch_operands = 0 : i64, tpu.core_type = #tpu.core_type<tc>, window_params = [{transform_indices = @transform_0, window_bounds = array<i64: 16, 128>}, {transform_indices = @transform_1, window_bounds = array<i64: 16, 128>}]} {
    %c0 = arith.constant 0 : index
    %c0_0 = arith.constant 0 : index
    %0 = vector.load %arg1[%c0, %c0_0] : memref<16x128xf32, #tpu.memory_space<vmem>>, vector<16x128xf32>
    %cst = arith.constant -2.000000e+00 : f32
    %1 = vector.broadcast %cst : f32 to vector<16x128xf32>
    %2 = arith.subf %0, %1 : vector<16x128xf32>
    %cst_1 = arith.constant 0.000000e+00 : f32
    %cst_2 = arith.constant 6.000000e+00 : f32
    %3 = vector.broadcast %cst_1 : f32 to vector<16x128xf32>
    %4 = arith.maximumf %3, %2 : vector<16x128xf32>
    %5 = vector.broadcast %cst_2 : f32 to vector<16x128xf32>
    %6 = arith.minimumf %5, %4 : vector<16x128xf32>
    %7 = arith.mulf %0, %6 : vector<16x128xf32>
    %cst_3 = arith.constant 6.000000e+00 : f32
    %8 = vector.broadcast %cst_3 : f32 to vector<16x128xf32>
    %9 = arith.divf %7, %8 : vector<16x128xf32>
    %c0_4 = arith.constant 0 : index
    %c0_5 = arith.constant 0 : index
    %10 = vector.load %arg2[%c0_4, %c0_5] : memref<16x128xf32, #tpu.memory_space<vmem>>, vector<16x128xf32>
    tpu.vector_store %arg2[%c0_4, %c0_5], %9 {strides = array<i32>} : memref<16x128xf32, #tpu.memory_space<vmem>>, vector<16x128xf32>,
    return
  }
  func.func @transform_0(%arg0: i32) -> (i32, i32) {
    %c0_i32 = arith.constant 0 : i32
    %c0_i32_0 = arith.constant 0 : i32
    return %arg0, %c0_i32 : i32, i32
  }
  func.func @transform_1(%arg0: i32) -> (i32, i32) {
    %c0_i32 = arith.constant 0 : i32
    %c0_i32_0 = arith.constant 0 : i32
    return %arg0, %c0_i32 : i32, i32
  }
}

</mosaic_0001>

<llo_original>
// kernel: tpu_custom_call.1
$region0: #{tpu_custom_call.1}
  #allocation0 [shape = 'u32[]', space=smem, size = 0x4, offset = 0x4, fixed_abs, tag = 'smem constant byte address 0x4 - core index']
  #allocation1 [shape = 'u32[72,128]{1,0:T(1,128)}', space=vmem, size = 0x9000, scoped, tag = 'internal scratch']
  %s0 = inlined_call_operand.hbm [shape: f32[16,128], index: 0, kind: input, shape index: {}]
  %s1 = inlined_call_operand.hbm [shape: f32[16,128], index: 1, kind: output, shape index: {}]
  %s2 = sld [smem:[#allocation0]]
  $region18: #{tpu_custom_call.1} parent=0
    _
  %s4 = ssub.s32 1, %s2
  %s5 = scalar_select 0, %s4, %s2
  $region1: #{tpu_custom_call.1} parent=0
    #allocation2 [shape = 'u8[8192]{0}', space=vmem, size = 0x2000, scoped, tag = 'input window, operand 0, single buffered']
    #allocation3 [shape = 's32[1]{0}', space=sflag, size = 0x4, scoped, tag = 'scoped memory for tpu_custom_call.1']
    #allocation4 [shape = 's32[1]{0}', space=sflag, size = 0x4, scoped, tag = 'scoped memory for tpu_custom_call.1']
    #allocation5 [shape = 'u8[8192]{0}', space=vmem, size = 0x2000, scoped, tag = 'output window, operand 0, single buffered']
    %6 = vsyncpa [#allocation3], 0
    %7 = vsyncpa [#allocation4], 0
    // Predicated region
    $region2: #{tpu_custom_call.1} parent=1 // pred_check
      _
    $region3: #{tpu_custom_call.1} parent=1 // pred_check_branch
      %9 = sbr.rel (0) target = $region5
    $region4: #{tpu_custom_call.1} parent=1 // pred_region
      %11 = vsyncadd [#allocation3], 0
      %s12 = sshll.u32 %s0, 4
      %s13 = int_to_ptr.hbm [resolvable:$true] %s12
      %s14 = sshll.u32 [#allocation2], 4
      %s15 = int_to_ptr.vmem [resolvable:$true] %s14
      %20 = dma.hbm_to_vmem [thread:$0]  %s13, 256, %s15, [#allocation3], 128, 128, 8
    $region5: #{tpu_custom_call.1} parent=1 // pred_fallthru
      _
    // Predicated region
    $region6: #{tpu_custom_call.1} parent=1 // pred_check
      _
    $region7: #{tpu_custom_call.1} parent=1 // pred_check_branch
      %22 = sbr.rel (0) target = $region9
    $region8: #{tpu_custom_call.1} parent=1 // pred_region
      %24 = dma.done [#allocation3], 256
    $region9: #{tpu_custom_call.1} parent=1 // pred_fallthru
      _
    %v25 = vld [vmem:[#allocation2] sm:$0xff]
    %v26 = vld [vmem:[#allocation2 + $0x8] sm:$0xff]
    %v27 = vsub.f32 %v25, -2.0
    %v28 = vsub.f32 %v26, -2.0
    %v29 = vmax.f32 %v27, 0.0
    %v30 = vmax.f32 %v28, 0.0
    %v31 = vmin.f32 %v29, 6.0
    %v32 = vmin.f32 %v30, 6.0
    %v33 = vmul.f32 %v25, %v31
    %v34 = vmul.f32 %v26, %v32
    %v35 = vrcp.pop 6.0
    %v36 = vmul.f32 6.0, %v35
    %v37 = vsub.f32 1.0, %v36
    %v38 = vmul.f32 %v35, %v37
    %v39 = vadd.f32 %v35, %v38
    %vm40 = vweird.f32 %v35
    %v41 = vsel %vm40, %v35, %v39
    %v42 = vmul.f32 %v33, %v41
    %v43 = vmul.f32 %v34, %v41
    %44 = vst [vmem:[#allocation5] sm:$0xff] %v42
    %45 = vst [vmem:[#allocation5 + $0x8] sm:$0xff] %v43
    // Predicated region
    $region10: #{tpu_custom_call.1} parent=1 // pred_check
      _
    $region11: #{tpu_custom_call.1} parent=1 // pred_check_branch
      %47 = sbr.rel (0) target = $region13
    $region12: #{tpu_custom_call.1} parent=1 // pred_region
      %49 = vsyncadd [#allocation4], 0
      %s50 = sshll.u32 [#allocation5], 4
      %s51 = int_to_ptr.vmem [resolvable:$true] %s50
      %s52 = sshll.u32 %s1, 4
      %s53 = int_to_ptr.hbm [resolvable:$true] %s52
      %58 = dma.vmem_to_hbm [thread:$0]  %s51, 256, %s53, [#allocation4], 128, 128, 8
    $region13: #{tpu_custom_call.1} parent=1 // pred_fallthru
      _
    // Predicated region
    $region14: #{tpu_custom_call.1} parent=1 // pred_check
      _
    $region15: #{tpu_custom_call.1} parent=1 // pred_check_branch
      %60 = sbr.rel (0) target = $region17
    $region16: #{tpu_custom_call.1} parent=1 // pred_region
      %62 = dma.done [#allocation4], 256
    $region17: #{tpu_custom_call.1} parent=1 // pred_fallthru
      _
    %63 = vsyncpa [#allocation3], 1
    %64 = vsyncpa [#allocation4], 1

</llo_original>
